<compile_context>
chip_gen: v5e
topology: v5e:2x2
jax: 0.10.0
libtpu: 0.0.40
codegen_flags: <defaults>
</compile_context>

<pallas_src>
import jax
import jax.numpy as jnp
from jax.experimental import pallas as pl
from jax.experimental.pallas import tpu as pltpu

BN_EPS = 1e-5


def _bn_train(h, g, beta):
    """Train-mode BatchNorm1d on an (B, t) f32 tile.

    Batch statistics, biased variance, centered two-pass second moment.
    Folded into a single per-feature scale/shift (one fused VPU pass).
    """
    mean = jnp.mean(h, axis=0, keepdims=True)            # (1, t)
    c = h - mean
    var = jnp.mean(c * c, axis=0, keepdims=True)         # (1, t)
    scale = g * jax.lax.rsqrt(var + BN_EPS)               # EUP rsqrt
    return c * scale + beta


def _fused_mlp_kernel(x_ref, w1_ref, g1_ref, b1_ref,
                      w2_ref, g2_ref, b2_ref, o_ref, h_ref):
    # Layer1 (Linear -> BN -> ReLU): computed once, result kept in VMEM scratch
    # (bf16) for the rest of the grid.  Sequential dependence -> "arbitrary".
    @pl.when(pl.program_id(0) == 0)
    def _():
        h = jnp.dot(x_ref[...], w1_ref[...],
                    preferred_element_type=jnp.float32)            # MXU, f32 acc
        y = jnp.maximum(_bn_train(h, g1_ref[...], b1_ref[...]), 0.0)
        h_ref[...] = y.astype(h_ref.dtype)

    # Layer3 (Linear -> BN, no ReLU): one output-feature tile per grid step,
    # W2 tile streamed (double-buffered) from HBM.
    h2 = jnp.dot(h_ref[...], w2_ref[...],
                 preferred_element_type=jnp.float32)
    o_ref[...] = _bn_train(h2, g2_ref[...], b2_ref[...]).astype(o_ref.dtype)


def _vmem_budget_bytes():
    """Generation-aware usable VMEM: ~48 MiB on v7x (64 MiB/TC), ~96 MiB on v5e/v6e."""
    try:
        cap = int(pltpu.get_tpu_info().vmem_capacity_bytes)
    except Exception:  # no TPU info at trace time -> conservative (v7x-safe)
        cap = 64 << 20
    return max(32 << 20, (cap * 3) // 4)


def _pick_tile_n(N, B, H, out_itemsize, budget_bytes, resident_bytes, max_block_n):
    """Largest 128-aligned divisor of N whose double-buffered streamed blocks fit."""
    cap = min(max_block_n, N if N < 256 else N // 2)   # >=2 grid steps when possible
    cands = [t for t in range(128, cap + 1, 128) if N % t == 0]
    if not cands:
        # Non-128-divisible N: a partial lane tile would break the (8,128)
        # layout rule, so fall back to a single full-width tile.
        return N
    avail = budget_bytes - resident_bytes
    tn = cands[0]
    for t in cands:
        streamed = 2 * (H * t * 2 + B * t * out_itemsize + 2 * t * 4)
        if streamed <= avail:
            tn = t
    return tn


def projection_mlp(x, w1, g1, beta1, w2, g2, beta2, *, max_block_n=1024):
    """SimSiam projection MLP (num_layers=2), train-mode BN, one fused kernel.

    x: (B, in_dim); w1: (in_dim, H); w2: (H, out_dim); g*/beta*: (1, dim) f32.
    Pass w1/w2 (and x) already in bf16 to avoid a per-forward re-cast; f32
    inputs are cast here as a fallback.  Linear biases are intentionally
    absent: train-mode BN cancels them exactly.
    """
    B, K = x.shape
    Kw, H = w1.shape
    Hw, N = w2.shape
    assert K == Kw and H == Hw, (x.shape, w1.shape, w2.shape)

    x16 = x if x.dtype == jnp.bfloat16 else x.astype(jnp.bfloat16)
    w1_16 = w1 if w1.dtype == jnp.bfloat16 else w1.astype(jnp.bfloat16)
    w2_16 = w2 if w2.dtype == jnp.bfloat16 else w2.astype(jnp.bfloat16)
    g1 = g1.astype(jnp.float32)
    beta1 = beta1.astype(jnp.float32)
    g2 = g2.astype(jnp.float32)
    beta2 = beta2.astype(jnp.float32)

    out_dtype = jnp.float32
    out_bytes = jnp.dtype(out_dtype).itemsize
    budget = _vmem_budget_bytes()

    def build(single_buffer_consts):
        cb = 1 if single_buffer_consts else 2
        # Resident: x, w1, g1, beta1 (x cb buffers) + the bf16 h scratch.
        resident = cb * (B * K * 2 + K * H * 2 + 2 * H * 4) + B * H * 2
        tn = _pick_tile_n(N, B, H, out_bytes, budget, resident, max_block_n)
        grid = (N // tn,)
        const_kwargs = ({"pipeline_mode": pl.Buffered(1)}
                        if single_buffer_consts else {})
        in_specs = [
            pl.BlockSpec((B, K), lambda j: (0, 0), **const_kwargs),  # x (resident)
            pl.BlockSpec((K, H), lambda j: (0, 0), **const_kwargs),  # W1 (resident)
            pl.BlockSpec((1, H), lambda j: (0, 0), **const_kwargs),  # gamma1
            pl.BlockSpec((1, H), lambda j: (0, 0), **const_kwargs),  # beta1
            pl.BlockSpec((H, tn), lambda j: (0, j)),                  # W2 tile (streamed)
            pl.BlockSpec((1, tn), lambda j: (0, j)),                  # gamma2 tile
            pl.BlockSpec((1, tn), lambda j: (0, j)),                  # beta2 tile
        ]
        return pl.pallas_call(
            _fused_mlp_kernel,
            out_shape=jax.ShapeDtypeStruct((B, N), out_dtype),
            grid=grid,
            in_specs=in_specs,
            out_specs=pl.BlockSpec((B, tn), lambda j: (0, j)),
            scratch_shapes=[pltpu.VMEM((B, H), jnp.bfloat16)],       # layer-1 output
            compiler_params=pltpu.CompilerParams(
                # Layer-2 tiles depend on the step-0 scratch write -> sequential.
                dimension_semantics=("arbitrary",),
                vmem_limit_bytes=int(budget),
            ),
        )

    args = (x16, w1_16, g1, beta1, w2_16, g2, beta2)
    try:
        return build(True)(*args)
    except Exception:
        # Some jax versions reject pl.Buffered(1) on the top-level grid;
        # rebuild with default (double-buffered) constant blocks.
        return build(False)(*args)


def _reference(x, w1, b1, g1, beta1, w2, b2, g2, beta2):
    """Pure-JAX f32 reference of the PyTorch module (train mode), incl. biases."""
    def bn(h, g, beta):
        m = h.mean(0, keepdims=True)
        v = ((h - m) ** 2).mean(0, keepdims=True)
        return (h - m) / jnp.sqrt(v + BN_EPS) * g + beta

    h = jnp.maximum(bn(x @ w1 + b1, g1, beta1), 0.0)
    return bn(h @ w2 + b2, g2, beta2)


if __name__ == "__main__":
    # Small shapes consistent with the module: batch=8, in_dim=32, hidden=128, out_dim=128.
    B, in_dim, hidden_dim, out_dim = 8, 32, 128, 128

    key = jax.random.PRNGKey(0)
    kx, kw1, kb1, kw2, kb2, kg1, kg2 = jax.random.split(key, 7)

    x = jax.random.normal(kx, (B, in_dim), dtype=jnp.float32)

    w1 = jax.random.normal(kw1, (in_dim, hidden_dim), dtype=jnp.float32) / jnp.sqrt(in_dim)
    b1 = jax.random.normal(kb1, (1, hidden_dim), dtype=jnp.float32) * 0.01
    g1 = 1.0 + 0.1 * jax.random.normal(kg1, (1, hidden_dim), dtype=jnp.float32)
    beta1 = jnp.zeros((1, hidden_dim), dtype=jnp.float32)

    w2 = jax.random.normal(kw2, (hidden_dim, out_dim), dtype=jnp.float32) / jnp.sqrt(hidden_dim)
    b2 = jax.random.normal(kb2, (1, out_dim), dtype=jnp.float32) * 0.01
    g2 = 1.0 + 0.1 * jax.random.normal(kg2, (1, out_dim), dtype=jnp.float32)
    beta2 = jnp.zeros((1, out_dim), dtype=jnp.float32)

    # Cast the weights to bf16 ONCE at init (not inside the forward).
    w1_bf16 = w1.astype(jnp.bfloat16)
    w2_bf16 = w2.astype(jnp.bfloat16)

    out = projection_mlp(x, w1_bf16, g1, beta1, w2_bf16, g2, beta2)
    out = jax.block_until_ready(out)

    # Reference includes the Linear biases: train-mode BN cancels them exactly,
    # so the bias-free kernel must still agree.  Tolerance loosened for the
    # bf16 MXU feed.
    ref = _reference(x, w1, b1, g1, beta1, w2, b2, g2, beta2)
    assert out.shape == (B, out_dim)
    assert jnp.allclose(out, ref, atol=5e-2, rtol=5e-2), (
        "kernel mismatch vs reference: max abs err = "
        f"{jnp.max(jnp.abs(out - ref))}")

    print("KERNEL_OK")
</pallas_src>

<mosaic_0001>
module attributes {stable_mosaic.version = 11 : i64} {
  func.func @_fused_mlp_kernel(%arg0: i32, %arg1: memref<8x32xbf16, #tpu.memory_space<vmem>>, %arg2: memref<32x128xbf16, #tpu.memory_space<vmem>>, %arg3: memref<1x128xf32, #tpu.memory_space<vmem>>, %arg4: memref<1x128xf32, #tpu.memory_space<vmem>>, %arg5: memref<128x128xbf16, #tpu.memory_space<vmem>>, %arg6: memref<1x128xf32, #tpu.memory_space<vmem>>, %arg7: memref<1x128xf32, #tpu.memory_space<vmem>>, %arg8: memref<8x128xf32, #tpu.memory_space<vmem>>, %arg9: memref<8x128xbf16, #tpu.memory_space<vmem>>) attributes {dimension_semantics = [#tpu.dimension_semantics<arbitrary>], iteration_bounds = array<i64: 1>, scalar_prefetch = 0 : i64, scratch_operands = 1 : i64, tpu.core_type = #tpu.core_type<tc>, window_params = [{pipeline_mode = #tpu.pipeline_mode<synchronous>, transform_indices = @transform_0, window_bounds = array<i64: 8, 32>}, {pipeline_mode = #tpu.pipeline_mode<synchronous>, transform_indices = @transform_1, window_bounds = array<i64: 32, 128>}, {pipeline_mode = #tpu.pipeline_mode<synchronous>, transform_indices = @transform_2, window_bounds = array<i64: 1, 128>}, {pipeline_mode = #tpu.pipeline_mode<synchronous>, transform_indices = @transform_3, window_bounds = array<i64: 1, 128>}, {transform_indices = @transform_4, window_bounds = array<i64: 128, 128>}, {transform_indices = @transform_5, window_bounds = array<i64: 1, 128>}, {transform_indices = @transform_6, window_bounds = array<i64: 1, 128>}, {transform_indices = @transform_7, window_bounds = array<i64: 8, 128>}]} {
    %c0_i32 = arith.constant 0 : i32
    %0 = arith.cmpi eq, %arg0, %c0_i32 : i32
    %1 = arith.extui %0 : i1 to i32
    %c0_i32_0 = arith.constant 0 : i32
    %2 = arith.cmpi ne, %1, %c0_i32_0 : i32
    scf.if %2 {
      %c0_15 = arith.constant 0 : index
      %c0_16 = arith.constant 0 : index
      %28 = vector.load %arg1[%c0_15, %c0_16] : memref<8x32xbf16, #tpu.memory_space<vmem>>, vector<8x32xbf16>
      %c0_17 = arith.constant 0 : index
      %c0_18 = arith.constant 0 : index
      %29 = vector.load %arg2[%c0_17, %c0_18] : memref<32x128xbf16, #tpu.memory_space<vmem>>, vector<32x128xbf16>
      %cst_19 = arith.constant dense<0.000000e+00> : vector<8x128xf32>
      %30 = tpu.matmul %28, %29, %cst_19 {dimension_numbers = #tpu.dot_dimension_numbers<[1], [0], [0], [1], [0, 0, 1, 1], [], []>} : vector<8x32xbf16>, vector<32x128xbf16>, vector<8x128xf32> -> vector<8x128xf32>
      %c0_20 = arith.constant 0 : index
      %c0_21 = arith.constant 0 : index
      %31 = vector.load %arg3[%c0_20, %c0_21] : memref<1x128xf32, #tpu.memory_space<vmem>>, vector<1x128xf32>
      %c0_22 = arith.constant 0 : index
      %c0_23 = arith.constant 0 : index
      %32 = vector.load %arg4[%c0_22, %c0_23] : memref<1x128xf32, #tpu.memory_space<vmem>>, vector<1x128xf32>
      %cst_24 = arith.constant dense<0.000000e+00> : vector<128xf32>
      %33 = vector.multi_reduction <add>, %30, %cst_24 [0] : vector<8x128xf32> to vector<128xf32>
      %34 = vector.shape_cast %33 : vector<128xf32> to vector<1x128xf32>
      %cst_25 = arith.constant 8.000000e+00 : f32
      %35 = vector.broadcast %cst_25 : f32 to vector<1x128xf32>
      %36 = arith.divf %34, %35 : vector<1x128xf32>
      %37 = vector.broadcast %36 : vector<1x128xf32> to vector<8x128xf32>
      %38 = arith.subf %30, %37 : vector<8x128xf32>
      %39 = arith.mulf %38, %38 : vector<8x128xf32>
      %cst_26 = arith.constant dense<0.000000e+00> : vector<128xf32>
      %40 = vector.multi_reduction <add>, %39, %cst_26 [0] : vector<8x128xf32> to vector<128xf32>
      %41 = vector.shape_cast %40 : vector<128xf32> to vector<1x128xf32>
      %cst_27 = arith.constant 8.000000e+00 : f32
      %42 = vector.broadcast %cst_27 : f32 to vector<1x128xf32>
      %43 = arith.divf %41, %42 : vector<1x128xf32>
      %cst_28 = arith.constant 9.99999974E-6 : f32
      %44 = vector.broadcast %cst_28 : f32 to vector<1x128xf32>
      %45 = arith.addf %43, %44 : vector<1x128xf32>
      %46 = math.rsqrt %45 : vector<1x128xf32>
      %47 = arith.mulf %31, %46 : vector<1x128xf32>
      %48 = vector.broadcast %47 : vector<1x128xf32> to vector<8x128xf32>
      %49 = arith.mulf %38, %48 : vector<8x128xf32>
      %50 = vector.broadcast %32 : vector<1x128xf32> to vector<8x128xf32>
      %51 = arith.addf %49, %50 : vector<8x128xf32>
      %cst_29 = arith.constant 0.000000e+00 : f32
      %52 = vector.broadcast %cst_29 : f32 to vector<8x128xf32>
      %53 = arith.maximumf %51, %52 : vector<8x128xf32>
      %54 = arith.truncf %53 : vector<8x128xf32> to vector<8x128xbf16>
      %c0_30 = arith.constant 0 : index
      %c0_31 = arith.constant 0 : index
      %55 = vector.load %arg9[%c0_30, %c0_31] : memref<8x128xbf16, #tpu.memory_space<vmem>>, vector<8x128xbf16>
      tpu.vector_store %arg9[%c0_30, %c0_31], %54 {strides = array<i32>} : memref<8x128xbf16, #tpu.memory_space<vmem>>, vector<8x128xbf16>,
    } else {
    }
    %c0 = arith.constant 0 : index
    %c0_1 = arith.constant 0 : index
    %3 = vector.load %arg9[%c0, %c0_1] : memref<8x128xbf16, #tpu.memory_space<vmem>>, vector<8x128xbf16>
    %c0_2 = arith.constant 0 : index
    %c0_3 = arith.constant 0 : index
    %4 = vector.load %arg5[%c0_2, %c0_3] : memref<128x128xbf16, #tpu.memory_space<vmem>>, vector<128x128xbf16>
    %cst = arith.constant dense<0.000000e+00> : vector<8x128xf32>
    %5 = tpu.matmul %3, %4, %cst {dimension_numbers = #tpu.dot_dimension_numbers<[1], [0], [0], [1], [0, 0, 1, 1], [], []>} : vector<8x128xbf16>, vector<128x128xbf16>, vector<8x128xf32> -> vector<8x128xf32>
    %c0_4 = arith.constant 0 : index
    %c0_5 = arith.constant 0 : index
    %6 = vector.load %arg6[%c0_4, %c0_5] : memref<1x128xf32, #tpu.memory_space<vmem>>, vector<1x128xf32>
    %c0_6 = arith.constant 0 : index
    %c0_7 = arith.constant 0 : index
    %7 = vector.load %arg7[%c0_6, %c0_7] : memref<1x128xf32, #tpu.memory_space<vmem>>, vector<1x128xf32>
    %cst_8 = arith.constant dense<0.000000e+00> : vector<128xf32>
    %8 = vector.multi_reduction <add>, %5, %cst_8 [0] : vector<8x128xf32> to vector<128xf32>
    %9 = vector.shape_cast %8 : vector<128xf32> to vector<1x128xf32>
    %cst_9 = arith.constant 8.000000e+00 : f32
    %10 = vector.broadcast %cst_9 : f32 to vector<1x128xf32>
    %11 = arith.divf %9, %10 : vector<1x128xf32>
    %12 = vector.broadcast %11 : vector<1x128xf32> to vector<8x128xf32>
    %13 = arith.subf %5, %12 : vector<8x128xf32>
    %14 = arith.mulf %13, %13 : vector<8x128xf32>
    %cst_10 = arith.constant dense<0.000000e+00> : vector<128xf32>
    %15 = vector.multi_reduction <add>, %14, %cst_10 [0] : vector<8x128xf32> to vector<128xf32>
    %16 = vector.shape_cast %15 : vector<128xf32> to vector<1x128xf32>
    %cst_11 = arith.constant 8.000000e+00 : f32
    %17 = vector.broadcast %cst_11 : f32 to vector<1x128xf32>
    %18 = arith.divf %16, %17 : vector<1x128xf32>
    %cst_12 = arith.constant 9.99999974E-6 : f32
    %19 = vector.broadcast %cst_12 : f32 to vector<1x128xf32>
    %20 = arith.addf %18, %19 : vector<1x128xf32>
    %21 = math.rsqrt %20 : vector<1x128xf32>
    %22 = arith.mulf %6, %21 : vector<1x128xf32>
    %23 = vector.broadcast %22 : vector<1x128xf32> to vector<8x128xf32>
    %24 = arith.mulf %13, %23 : vector<8x128xf32>
    %25 = vector.broadcast %7 : vector<1x128xf32> to vector<8x128xf32>
    %26 = arith.addf %24, %25 : vector<8x128xf32>
    %c0_13 = arith.constant 0 : index
    %c0_14 = arith.constant 0 : index
    %27 = vector.load %arg8[%c0_13, %c0_14] : memref<8x128xf32, #tpu.memory_space<vmem>>, vector<8x128xf32>
    tpu.vector_store %arg8[%c0_13, %c0_14], %26 {strides = array<i32>} : memref<8x128xf32, #tpu.memory_space<vmem>>, vector<8x128xf32>,
    return
  }
  func.func @transform_0(%arg0: i32) -> (i32, i32) {
    %c0_i32 = arith.constant 0 : i32
    %c0_i32_0 = arith.constant 0 : i32
    %c0_i32_1 = arith.constant 0 : i32
    return %c0_i32, %c0_i32_0 : i32, i32
  }
  func.func @transform_1(%arg0: i32) -> (i32, i32) {
    %c0_i32 = arith.constant 0 : i32
    %c0_i32_0 = arith.constant 0 : i32
    %c0_i32_1 = arith.constant 0 : i32
    return %c0_i32, %c0_i32_0 : i32, i32
  }
  func.func @transform_2(%arg0: i32) -> (i32, i32) {
    %c0_i32 = arith.constant 0 : i32
    %c0_i32_0 = arith.constant 0 : i32
    %c0_i32_1 = arith.constant 0 : i32
    return %c0_i32, %c0_i32_0 : i32, i32
  }
  func.func @transform_3(%arg0: i32) -> (i32, i32) {
    %c0_i32 = arith.constant 0 : i32
    %c0_i32_0 = arith.constant 0 : i32
    %c0_i32_1 = arith.constant 0 : i32
    return %c0_i32, %c0_i32_0 : i32, i32
  }
  func.func @transform_4(%arg0: i32) -> (i32, i32) {
    %c0_i32 = arith.constant 0 : i32
    %c0_i32_0 = arith.constant 0 : i32
    return %c0_i32, %arg0 : i32, i32
  }
  func.func @transform_5(%arg0: i32) -> (i32, i32) {
    %c0_i32 = arith.constant 0 : i32
    %c0_i32_0 = arith.constant 0 : i32
    return %c0_i32, %arg0 : i32, i32
  }
  func.func @transform_6(%arg0: i32) -> (i32, i32) {
    %c0_i32 = arith.constant 0 : i32
    %c0_i32_0 = arith.constant 0 : i32
    return %c0_i32, %arg0 : i32, i32
  }
  func.func @transform_7(%arg0: i32) -> (i32, i32) {
    %c0_i32 = arith.constant 0 : i32
    %c0_i32_0 = arith.constant 0 : i32
    return %c0_i32, %arg0 : i32, i32
  }
}

module attributes {stable_mosaic.version = 11 : i64} {
  func.func @_fused_mlp_kernel(%arg0: i32, %arg1: memref<8x32xbf16, #tpu.memory_space<vmem>>, %arg2: memref<32x128xbf16, #tpu.memory_space<vmem>>, %arg3: memref<1x128xf32, #tpu.memory_space<vmem>>, %arg4: memref<1x128xf32, #tpu.memory_space<vmem>>, %arg5: memref<128x128xbf16, #tpu.memory_space<vmem>>, %arg6: memref<1x128xf32, #tpu.memory_space<vmem>>, %arg7: memref<1x128xf32, #tpu.memory_space<vmem>>, %arg8: memref<8x128xf32, #tpu.memory_space<vmem>>, %arg9: memref<8x128xbf16, #tpu.memory_space<vmem>>) attributes {dimension_semantics = [#tpu.dimension_semantics<arbitrary>], iteration_bounds = array<i64: 1>, scalar_prefetch = 0 : i64, scratch_operands = 1 : i64, tpu.core_type = #tpu.core_type<tc>, window_params = [{pipeline_mode = #tpu.pipeline_mode<synchronous>, transform_indices = @transform_0, window_bounds = array<i64: 8, 32>}, {pipeline_mode = #tpu.pipeline_mode<synchronous>, transform_indices = @transform_1, window_bounds = array<i64: 32, 128>}, {pipeline_mode = #tpu.pipeline_mode<synchronous>, transform_indices = @transform_2, window_bounds = array<i64: 1, 128>}, {pipeline_mode = #tpu.pipeline_mode<synchronous>, transform_indices = @transform_3, window_bounds = array<i64: 1, 128>}, {transform_indices = @transform_4, window_bounds = array<i64: 128, 128>}, {transform_indices = @transform_5, window_bounds = array<i64: 1, 128>}, {transform_indices = @transform_6, window_bounds = array<i64: 1, 128>}, {transform_indices = @transform_7, window_bounds = array<i64: 8, 128>}]} {
    %c0_i32 = arith.constant 0 : i32
    %0 = arith.cmpi eq, %arg0, %c0_i32 : i32
    %1 = arith.extui %0 : i1 to i32
    %c0_i32_0 = arith.constant 0 : i32
    %2 = arith.cmpi ne, %1, %c0_i32_0 : i32
    scf.if %2 {
      %c0_15 = arith.constant 0 : index
      %c0_16 = arith.constant 0 : index
      %28 = vector.load %arg1[%c0_15, %c0_16] : memref<8x32xbf16, #tpu.memory_space<vmem>>, vector<8x32xbf16>
      %c0_17 = arith.constant 0 : index
      %c0_18 = arith.constant 0 : index
      %29 = vector.load %arg2[%c0_17, %c0_18] : memref<32x128xbf16, #tpu.memory_space<vmem>>, vector<32x128xbf16>
      %cst_19 = arith.constant dense<0.000000e+00> : vector<8x128xf32>
      %30 = tpu.matmul %28, %29, %cst_19 {dimension_numbers = #tpu.dot_dimension_numbers<[1], [0], [0], [1], [0, 0, 1, 1], [], []>} : vector<8x32xbf16>, vector<32x128xbf16>, vector<8x128xf32> -> vector<8x128xf32>
      %c0_20 = arith.constant 0 : index
      %c0_21 = arith.constant 0 : index
      %31 = vector.load %arg3[%c0_20, %c0_21] : memref<1x128xf32, #tpu.memory_space<vmem>>, vector<1x128xf32>
      %c0_22 = arith.constant 0 : index
      %c0_23 = arith.constant 0 : index
      %32 = vector.load %arg4[%c0_22, %c0_23] : memref<1x128xf32, #tpu.memory_space<vmem>>, vector<1x128xf32>
      %cst_24 = arith.constant dense<0.000000e+00> : vector<128xf32>
      %33 = vector.multi_reduction <add>, %30, %cst_24 [0] : vector<8x128xf32> to vector<128xf32>
      %34 = vector.shape_cast %33 : vector<128xf32> to vector<1x128xf32>
      %cst_25 = arith.constant 8.000000e+00 : f32
      %35 = vector.broadcast %cst_25 : f32 to vector<1x128xf32>
      %36 = arith.divf %34, %35 : vector<1x128xf32>
      %37 = vector.broadcast %36 : vector<1x128xf32> to vector<8x128xf32>
      %38 = arith.subf %30, %37 : vector<8x128xf32>
      %39 = arith.mulf %38, %38 : vector<8x128xf32>
      %cst_26 = arith.constant dense<0.000000e+00> : vector<128xf32>
      %40 = vector.multi_reduction <add>, %39, %cst_26 [0] : vector<8x128xf32> to vector<128xf32>
      %41 = vector.shape_cast %40 : vector<128xf32> to vector<1x128xf32>
      %cst_27 = arith.constant 8.000000e+00 : f32
      %42 = vector.broadcast %cst_27 : f32 to vector<1x128xf32>
      %43 = arith.divf %41, %42 : vector<1x128xf32>
      %cst_28 = arith.constant 9.99999974E-6 : f32
      %44 = vector.broadcast %cst_28 : f32 to vector<1x128xf32>
      %45 = arith.addf %43, %44 : vector<1x128xf32>
      %46 = math.rsqrt %45 : vector<1x128xf32>
      %47 = arith.mulf %31, %46 : vector<1x128xf32>
      %48 = vector.broadcast %47 : vector<1x128xf32> to vector<8x128xf32>
      %49 = arith.mulf %38, %48 : vector<8x128xf32>
      %50 = vector.broadcast %32 : vector<1x128xf32> to vector<8x128xf32>
      %51 = arith.addf %49, %50 : vector<8x128xf32>
      %cst_29 = arith.constant 0.000000e+00 : f32
      %52 = vector.broadcast %cst_29 : f32 to vector<8x128xf32>
      %53 = arith.maximumf %51, %52 : vector<8x128xf32>
      %54 = arith.truncf %53 : vector<8x128xf32> to vector<8x128xbf16>
      %c0_30 = arith.constant 0 : index
      %c0_31 = arith.constant 0 : index
      %55 = vector.load %arg9[%c0_30, %c0_31] : memref<8x128xbf16, #tpu.memory_space<vmem>>, vector<8x128xbf16>
      tpu.vector_store %arg9[%c0_30, %c0_31], %54 {strides = array<i32>} : memref<8x128xbf16, #tpu.memory_space<vmem>>, vector<8x128xbf16>,
    } else {
    }
    %c0 = arith.constant 0 : index
    %c0_1 = arith.constant 0 : index
    %3 = vector.load %arg9[%c0, %c0_1] : memref<8x128xbf16, #tpu.memory_space<vmem>>, vector<8x128xbf16>
    %c0_2 = arith.constant 0 : index
    %c0_3 = arith.constant 0 : index
    %4 = vector.load %arg5[%c0_2, %c0_3] : memref<128x128xbf16, #tpu.memory_space<vmem>>, vector<128x128xbf16>
    %cst = arith.constant dense<0.000000e+00> : vector<8x128xf32>
    %5 = tpu.matmul %3, %4, %cst {dimension_numbers = #tpu.dot_dimension_numbers<[1], [0], [0], [1], [0, 0, 1, 1], [], []>} : vector<8x128xbf16>, vector<128x128xbf16>, vector<8x128xf32> -> vector<8x128xf32>
    %c0_4 = arith.constant 0 : index
    %c0_5 = arith.constant 0 : index
    %6 = vector.load %arg6[%c0_4, %c0_5] : memref<1x128xf32, #tpu.memory_space<vmem>>, vector<1x128xf32>
    %c0_6 = arith.constant 0 : index
    %c0_7 = arith.constant 0 : index
    %7 = vector.load %arg7[%c0_6, %c0_7] : memref<1x128xf32, #tpu.memory_space<vmem>>, vector<1x128xf32>
    %cst_8 = arith.constant dense<0.000000e+00> : vector<128xf32>
    %8 = vector.multi_reduction <add>, %5, %cst_8 [0] : vector<8x128xf32> to vector<128xf32>
    %9 = vector.shape_cast %8 : vector<128xf32> to vector<1x128xf32>
    %cst_9 = arith.constant 8.000000e+00 : f32
    %10 = vector.broadcast %cst_9 : f32 to vector<1x128xf32>
    %11 = arith.divf %9, %10 : vector<1x128xf32>
    %12 = vector.broadcast %11 : vector<1x128xf32> to vector<8x128xf32>
    %13 = arith.subf %5, %12 : vector<8x128xf32>
    %14 = arith.mulf %13, %13 : vector<8x128xf32>
    %cst_10 = arith.constant dense<0.000000e+00> : vector<128xf32>
    %15 = vector.multi_reduction <add>, %14, %cst_10 [0] : vector<8x128xf32> to vector<128xf32>
    %16 = vector.shape_cast %15 : vector<128xf32> to vector<1x128xf32>
    %cst_11 = arith.constant 8.000000e+00 : f32
    %17 = vector.broadcast %cst_11 : f32 to vector<1x128xf32>
    %18 = arith.divf %16, %17 : vector<1x128xf32>
    %cst_12 = arith.constant 9.99999974E-6 : f32
    %19 = vector.broadcast %cst_12 : f32 to vector<1x128xf32>
    %20 = arith.addf %18, %19 : vector<1x128xf32>
    %21 = math.rsqrt %20 : vector<1x128xf32>
    %22 = arith.mulf %6, %21 : vector<1x128xf32>
    %23 = vector.broadcast %22 : vector<1x128xf32> to vector<8x128xf32>
    %24 = arith.mulf %13, %23 : vector<8x128xf32>
    %25 = vector.broadcast %7 : vector<1x128xf32> to vector<8x128xf32>
    %26 = arith.addf %24, %25 : vector<8x128xf32>
    %c0_13 = arith.constant 0 : index
    %c0_14 = arith.constant 0 : index
    %27 = vector.load %arg8[%c0_13, %c0_14] : memref<8x128xf32, #tpu.memory_space<vmem>>, vector<8x128xf32>
    tpu.vector_store %arg8[%c0_13, %c0_14], %26 {strides = array<i32>} : memref<8x128xf32, #tpu.memory_space<vmem>>, vector<8x128xf32>,
    return
  }
  func.func @transform_0(%arg0: i32) -> (i32, i32) {
    %c0_i32 = arith.constant 0 : i32
    %c0_i32_0 = arith.constant 0 : i32
    %c0_i32_1 = arith.constant 0 : i32
    return %c0_i32, %c0_i32_0 : i32, i32
  }
  func.func @transform_1(%arg0: i32) -> (i32, i32) {
    %c0_i32 = arith.constant 0 : i32
    %c0_i32_0 = arith.constant 0 : i32
    %c0_i32_1 = arith.constant 0 : i32
    return %c0_i32, %c0_i32_0 : i32, i32
  }
  func.func @transform_2(%arg0: i32) -> (i32, i32) {
    %c0_i32 = arith.constant 0 : i32
    %c0_i32_0 = arith.constant 0 : i32
    %c0_i32_1 = arith.constant 0 : i32
    return %c0_i32, %c0_i32_0 : i32, i32
  }
  func.func @transform_3(%arg0: i32) -> (i32, i32) {
    %c0_i32 = arith.constant 0 : i32
    %c0_i32_0 = arith.constant 0 : i32
    %c0_i32_1 = arith.constant 0 : i32
    return %c0_i32, %c0_i32_0 : i32, i32
  }
  func.func @transform_4(%arg0: i32) -> (i32, i32) {
    %c0_i32 = arith.constant 0 : i32
    %c0_i32_0 = arith.constant 0 : i32
    return %c0_i32, %arg0 : i32, i32
  }
  func.func @transform_5(%arg0: i32) -> (i32, i32) {
    %c0_i32 = arith.constant 0 : i32
    %c0_i32_0 = arith.constant 0 : i32
    return %c0_i32, %arg0 : i32, i32
  }
  func.func @transform_6(%arg0: i32) -> (i32, i32) {
    %c0_i32 = arith.constant 0 : i32
    %c0_i32_0 = arith.constant 0 : i32
    return %c0_i32, %arg0 : i32, i32
  }
  func.func @transform_7(%arg0: i32) -> (i32, i32) {
    %c0_i32 = arith.constant 0 : i32
    %c0_i32_0 = arith.constant 0 : i32
    return %c0_i32, %arg0 : i32, i32
  }
}

</mosaic_0001>

<llo_original>
// kernel: tpu_custom_call.1
$region0: #{tpu_custom_call.1}
  #allocation0 [shape = 'u32[]', space=smem, size = 0x4, offset = 0x4, fixed_abs, tag = 'smem constant byte address 0x4 - core index']
  #allocation1 [shape = 'u32[72,128]{1,0:T(1,128)}', space=vmem, size = 0x9000, scoped, tag = 'internal scratch']
  #allocation2 [shape = 'bf16[8,128]{1,0:T(8,128)(2,1)}', space=vmem, size = 0x800, scoped, tag = 'scratch operand']
  %s0 = inlined_call_operand.hbm [shape: bf16[8,32], index: 0, kind: input, shape index: {}]
  %s1 = inlined_call_operand.hbm [shape: bf16[32,128], index: 1, kind: input, shape index: {}]
  %s2 = inlined_call_operand.vmem [shape: f32[1,128], index: 2, kind: input, shape index: {}]
  %s3 = inlined_call_operand.vmem [shape: f32[1,128], index: 3, kind: input, shape index: {}]
  %s4 = inlined_call_operand.hbm [shape: bf16[128,128], index: 4, kind: input, shape index: {}]
  %s5 = inlined_call_operand.vmem [shape: f32[1,128], index: 5, kind: input, shape index: {}]
  %s6 = inlined_call_operand.vmem [shape: f32[1,128], index: 6, kind: input, shape index: {}]
  %s7 = inlined_call_operand.hbm [shape: f32[8,128], index: 7, kind: output, shape index: {}]
  %s8 = sld [smem:[#allocation0]]
  $region54: #{tpu_custom_call.1} parent=0
    _
  %s10 = ssub.s32 1, %s8
  %s11 = scalar_select 0, %s10, %s8
  $region1: #{tpu_custom_call.1} parent=0
    #allocation3 [shape = 'u8[2048]{0}', space=vmem, size = 0x800, scoped, tag = 'input window, operand 0, single buffered']
    #allocation4 [shape = 's32[1]{0}', space=sflag, size = 0x4, scoped, tag = 'scoped memory for tpu_custom_call.1']
    #allocation5 [shape = 's32[1]{0}', space=sflag, size = 0x4, scoped, tag = 'scoped memory for tpu_custom_call.1']
    #allocation6 [shape = 'u8[8192]{0}', space=vmem, size = 0x2000, scoped, tag = 'input window, operand 1, single buffered']
    #allocation7 [shape = 's32[1]{0}', space=sflag, size = 0x4, scoped, tag = 'scoped memory for tpu_custom_call.1']
    #allocation8 [shape = 'u8[32768]{0}', space=vmem, size = 0x8000, scoped, tag = 'input window, operand 4, single buffered']
    #allocation9 [shape = 'u8[4096]{0}', space=vmem, size = 0x1000, scoped, tag = 'output window, operand 0, single buffered']
    %12 = vsyncpa [#allocation4], 0
    %13 = vsyncpa [#allocation7], 0
    %14 = vsyncpa [#allocation5], 0
    // Predicated region
    $region2: #{tpu_custom_call.1} parent=1 // pred_check
      _
    $region3: #{tpu_custom_call.1} parent=1 // pred_check_branch
      %16 = sbr.rel (0) target = $region5
    $region4: #{tpu_custom_call.1} parent=1 // pred_region
      %18 = vsyncadd [#allocation4], 0
      %s20 = sshll.u32 %s0, 4
      %s21 = int_to_ptr.hbm [resolvable:$true] %s20
      %s22 = sshll.u32 [#allocation3], 4
      %s23 = int_to_ptr.vmem [resolvable:$true] %s22
      %25 = dma.hbm_to_vmem [thread:$0]  %s21, 64, %s23, [#allocation4]
    $region5: #{tpu_custom_call.1} parent=1 // pred_fallthru
      _
    // Predicated region
    $region6: #{tpu_custom_call.1} parent=1 // pred_check
      _
    $region7: #{tpu_custom_call.1} parent=1 // pred_check_branch
      %27 = sbr.rel (0) target = $region9
    $region8: #{tpu_custom_call.1} parent=1 // pred_region
      %29 = vsyncadd [#allocation7], 0
      %s30 = sshll.u32 %s1, 4
      %s31 = int_to_ptr.hbm [resolvable:$true] %s30
      %s32 = sshll.u32 [#allocation6], 4
      %s33 = int_to_ptr.vmem [resolvable:$true] %s32
      %38 = dma.hbm_to_vmem [thread:$0]  %s31, 256, %s33, [#allocation7], 64, 64, 4
    $region9: #{tpu_custom_call.1} parent=1 // pred_fallthru
      _
    // Predicated region
    $region10: #{tpu_custom_call.1} parent=1 // pred_check
      _
    $region11: #{tpu_custom_call.1} parent=1 // pred_check_branch
      %40 = sbr.rel (0) target = $region13
    $region12: #{tpu_custom_call.1} parent=1 // pred_region
      _
    $region13: #{tpu_custom_call.1} parent=1 // pred_fallthru
      _
    // Predicated region
    $region14: #{tpu_custom_call.1} parent=1 // pred_check
      _
    $region15: #{tpu_custom_call.1} parent=1 // pred_check_branch
      %42 = sbr.rel (0) target = $region17
    $region16: #{tpu_custom_call.1} parent=1 // pred_region
      _
    $region17: #{tpu_custom_call.1} parent=1 // pred_fallthru
      _
    // Predicated region
    $region18: #{tpu_custom_call.1} parent=1 // pred_check
      _
    $region19: #{tpu_custom_call.1} parent=1 // pred_check_branch
      %44 = sbr.rel (0) target = $region21
    $region20: #{tpu_custom_call.1} parent=1 // pred_region
      %46 = vsyncadd [#allocation7], 0
      %s47 = sshll.u32 %s4, 4
      %s48 = int_to_ptr.hbm [resolvable:$true] %s47
      %s49 = sshll.u32 [#allocation8], 4
      %s50 = int_to_ptr.vmem [resolvable:$true] %s49
      %55 = dma.hbm_to_vmem [thread:$0]  %s48, 1024, %s50, [#allocation7], 64, 64, 4
    $region21: #{tpu_custom_call.1} parent=1 // pred_fallthru
      _
    // Predicated region
    $region22: #{tpu_custom_call.1} parent=1 // pred_check
      _
    $region23: #{tpu_custom_call.1} parent=1 // pred_check_branch
      %57 = sbr.rel (0) target = $region25
    $region24: #{tpu_custom_call.1} parent=1 // pred_region
      _
    $region25: #{tpu_custom_call.1} parent=1 // pred_fallthru
      _
    // Predicated region
    $region26: #{tpu_custom_call.1} parent=1 // pred_check
      _
    $region27: #{tpu_custom_call.1} parent=1 // pred_check_branch
      %59 = sbr.rel (0) target = $region29
    $region28: #{tpu_custom_call.1} parent=1 // pred_region
      _
    $region29: #{tpu_custom_call.1} parent=1 // pred_fallthru
      _
    // Predicated region
    $region30: #{tpu_custom_call.1} parent=1 // pred_check
      _
    $region31: #{tpu_custom_call.1} parent=1 // pred_check_branch
      %61 = sbr.rel (0) target = $region33
    $region32: #{tpu_custom_call.1} parent=1 // pred_region
      %63 = dma.done [#allocation4], 64
    $region33: #{tpu_custom_call.1} parent=1 // pred_fallthru
      _
    // Predicated region
    $region34: #{tpu_custom_call.1} parent=1 // pred_check
      _
    $region35: #{tpu_custom_call.1} parent=1 // pred_check_branch
      %65 = sbr.rel (0) target = $region37
    $region36: #{tpu_custom_call.1} parent=1 // pred_region
      %67 = dma.done [#allocation7], 256
    $region37: #{tpu_custom_call.1} parent=1 // pred_fallthru
      _
    // Predicated region
    $region38: #{tpu_custom_call.1} parent=1 // pred_check
      _
    $region39: #{tpu_custom_call.1} parent=1 // pred_check_branch
      %69 = sbr.rel (0) target = $region41
    $region40: #{tpu_custom_call.1} parent=1 // pred_region
      %71 = dma.done [#allocation7], 1024
    $region41: #{tpu_custom_call.1} parent=1 // pred_fallthru
      _
    %p73 = scmp.eq.s32.totalorder 0, 0
    // Predicated region
    $region42: #{tpu_custom_call.1} parent=1 // pred_check
      %p74 = pneg %p73
    $region43: #{tpu_custom_call.1} parent=1 // pred_check_branch
      %76 = sbr.rel (%p74) target = $region45
    $region44: #{tpu_custom_call.1} parent=1 // pred_region
      %v77 = vld [vmem:[#allocation3] sm:$0xf]
      %v78 = vld [vmem:[#allocation6] sm:$0xf]
      %v79 = vld [vmem:[#allocation6 + $0x4] sm:$0xf]
      %v80 = vld [vmem:[#allocation6 + $0x8] sm:$0xf]
      %v81 = vld [vmem:[#allocation6 + $0xc] sm:$0xf]
      %v86 = vunpack.c.l.b16 %v78
      %v87 = vunpack.c.l.b16 %v79
      %v88 = vunpack.c.l.b16 %v80
      %v89 = vunpack.c.l.b16 %v81
      %v90 = vpack.c.b16 %v87, %v86
      %v91 = vpack.c.b16 %v89, %v88
      %vm94 = vcmask 261120
      %v96 = vsel %vm94, %v77, 0
      %98 = vmatpush.bf16.msra.mxu0 0
      %99 = vmatpush.bf16.msra.mxu0 0
      %100 = vmatpush.bf16.msra.mxu0 0
      %101 = vmatpush.bf16.msra.mxu0 0
      %102 = vmatpush.bf16.msra.mxu0 0
      %103 = vmatpush.bf16.msra.mxu0 0
      %104 = vmatpush.bf16.msra.mxu0 %v91
      %105 = vmatpush.bf16.msra.mxu0 %v90
      %106 = vmatmul.bf16.gmra.mxu0 %v96
      %v107 = vpop.f32.mrf.mxu0
      %v108 = vadd.f32 0.0, %v107
      %v109 = vpop.f32.mrf.mxu0
      %110 = vdwg.mxu0
      %v111 = vld [vmem:[%s2] sm:$0x1]
      %v112 = vld [vmem:[%s3] sm:$0x1]
      %v113 = vrot.slane %v108, 4
      %v114 = vadd.f32 %v108, %v113
      %v115 = vrot.slane %v114, 2
      %v116 = vadd.f32 %v114, %v115
      %v117 = vrot.slane %v116, 1
      %v118 = vadd.f32 %v116, %v117
      %v119 = vrcp.pop 8.0
      %v120 = vmul.f32 8.0, %v119
      %v121 = vsub.f32 1.0, %v120
      %v122 = vmul.f32 %v119, %v121
      %v123 = vadd.f32 %v119, %v122
      %vm124 = vweird.f32 %v119
      %v125 = vsel %vm124, %v119, %v123
      %v126 = vmul.f32 %v118, %v125
      %v127 = vsub.f32 %v108, %v126
      %v128 = vmul.f32 %v127, %v127
      %v129 = vrot.slane %v128, 4
      %v130 = vadd.f32 %v128, %v129
      %v131 = vrot.slane %v130, 2
      %v132 = vadd.f32 %v130, %v131
      %v133 = vrot.slane %v132, 1
      %v134 = vadd.f32 %v132, %v133
      %v135 = vmul.f32 %v134, %v125
      %v136 = vadd.f32 %v135, 1e-05
      %v137 = vrsqrt.pop %v136
      %v138 = vmul.f32 %v137, %v136
      %v139 = vmul.f32 %v138, %v137
      %v140 = vmul.f32 0.5, %v139
      %v141 = vsub.f32 1.5, %v140
      %v142 = vmul.f32 %v137, %v141
      %vm143 = vweird.f32 %v136
      %vm144 = vweird.f32 %v137
      %vm145 = vmor %vm143, %vm144
      %v146 = vsel %vm145, %v137, %v142
      %v147 = vmul.f32 %v111, %v146
      %v149 = vperm.slane %v147, 0
      %v151 = vmul.f32 %v127, %v149
      %v153 = vperm.slane %v112, 0
      %v155 = vadd.f32 %v151, %v153
      %v156 = vmax.f32 %v155, 0.0
      %v157 = vpack.c.bf16 %v156, %v156
      %158 = vst [vmem:[#allocation2] sm:$0xf] %v157
    $region45: #{tpu_custom_call.1} parent=1 // pred_fallthru
      _
    %v159 = vld [vmem:[#allocation2] sm:$0xf]
    %v160 = vld [vmem:[#allocation8] sm:$0xf]
    %v161 = vld [vmem:[#allocation8 + $0x4] sm:$0xf]
    %v162 = vld [vmem:[#allocation8 + $0x8] sm:$0xf]
    %v163 = vld [vmem:[#allocation8 + $0xc] sm:$0xf]
    %v164 = vld [vmem:[#allocation8 + $0x10] sm:$0xf]
    %v165 = vld [vmem:[#allocation8 + $0x14] sm:$0xf]
    %v166 = vld [vmem:[#allocation8 + $0x18] sm:$0xf]
    %v167 = vld [vmem:[#allocation8 + $0x1c] sm:$0xf]
    %v168 = vld [vmem:[#allocation8 + $0x20] sm:$0xf]
    %v169 = vld [vmem:[#allocation8 + $0x24] sm:$0xf]
    %v170 = vld [vmem:[#allocation8 + $0x28] sm:$0xf]
    %v171 = vld [vmem:[#allocation8 + $0x2c] sm:$0xf]
    %v172 = vld [vmem:[#allocation8 + $0x30] sm:$0xf]
    %v173 = vld [vmem:[#allocation8 + $0x34] sm:$0xf]
    %v174 = vld [vmem:[#allocation8 + $0x38] sm:$0xf]
    %v175 = vld [vmem:[#allocation8 + $0x3c] sm:$0xf]
    %v192 = vunpack.c.l.b16 %v160
    %v193 = vunpack.c.l.b16 %v161
    %v194 = vunpack.c.l.b16 %v162
    %v195 = vunpack.c.l.b16 %v163
    %v196 = vunpack.c.l.b16 %v164
    %v197 = vunpack.c.l.b16 %v165
    %v198 = vunpack.c.l.b16 %v166
    %v199 = vunpack.c.l.b16 %v167
    %v200 = vunpack.c.l.b16 %v168
    %v201 = vunpack.c.l.b16 %v169
    %v202 = vunpack.c.l.b16 %v170
    %v203 = vunpack.c.l.b16 %v171
    %v204 = vunpack.c.l.b16 %v172
    %v205 = vunpack.c.l.b16 %v173
    %v206 = vunpack.c.l.b16 %v174
    %v207 = vunpack.c.l.b16 %v175
    %v208 = vpack.c.b16 %v193, %v192
    %v209 = vpack.c.b16 %v195, %v194
    %v210 = vpack.c.b16 %v197, %v196
    %v211 = vpack.c.b16 %v199, %v198
    %v212 = vpack.c.b16 %v201, %v200
    %v213 = vpack.c.b16 %v203, %v202
    %v214 = vpack.c.b16 %v205, %v204
    %v215 = vpack.c.b16 %v207, %v206
    %224 = vmatpush.bf16.msra.mxu0 %v215
    %225 = vmatpush.bf16.msra.mxu0 %v214
    %226 = vmatpush.bf16.msra.mxu0 %v213
    %227 = vmatpush.bf16.msra.mxu0 %v212
    %228 = vmatpush.bf16.msra.mxu0 %v211
    %229 = vmatpush.bf16.msra.mxu0 %v210
    %230 = vmatpush.bf16.msra.mxu0 %v209
    %231 = vmatpush.bf16.msra.mxu0 %v208
    %232 = vmatmul.bf16.gmra.mxu0 %v159
    %v233 = vpop.f32.mrf.mxu0
    %v234 = vadd.f32 0.0, %v233
    %v235 = vpop.f32.mrf.mxu0
    %236 = vdwg.mxu0
    %v237 = vld [vmem:[%s5] sm:$0x1]
    %v238 = vld [vmem:[%s6] sm:$0x1]
    %v239 = vrot.slane %v234, 4
    %v240 = vadd.f32 %v234, %v239
    %v241 = vrot.slane %v240, 2
    %v242 = vadd.f32 %v240, %v241
    %v243 = vrot.slane %v242, 1
    %v244 = vadd.f32 %v242, %v243
    %v245 = vrcp.pop 8.0
    %v246 = vmul.f32 8.0, %v245
    %v247 = vsub.f32 1.0, %v246
    %v248 = vmul.f32 %v245, %v247
    %v249 = vadd.f32 %v245, %v248
    %vm250 = vweird.f32 %v245
    %v251 = vsel %vm250, %v245, %v249
    %v252 = vmul.f32 %v244, %v251
    %v253 = vsub.f32 %v234, %v252
    %v254 = vmul.f32 %v253, %v253
    %v255 = vrot.slane %v254, 4
    %v256 = vadd.f32 %v254, %v255
    %v257 = vrot.slane %v256, 2
    %v258 = vadd.f32 %v256, %v257
    %v259 = vrot.slane %v258, 1
    %v260 = vadd.f32 %v258, %v259
    %v261 = vmul.f32 %v260, %v251
    %v262 = vadd.f32 %v261, 1e-05
    %v263 = vrsqrt.pop %v262
    %v264 = vmul.f32 %v263, %v262
    %v265 = vmul.f32 %v264, %v263
    %v266 = vmul.f32 0.5, %v265
    %v267 = vsub.f32 1.5, %v266
    %v268 = vmul.f32 %v263, %v267
    %vm269 = vweird.f32 %v262
    %vm270 = vweird.f32 %v263
    %vm271 = vmor %vm269, %vm270
    %v272 = vsel %vm271, %v263, %v268
    %v273 = vmul.f32 %v237, %v272
    %v275 = vperm.slane %v273, 0
    %v277 = vmul.f32 %v253, %v275
    %v279 = vperm.slane %v238, 0
    %v281 = vadd.f32 %v277, %v279
    %282 = vst [vmem:[#allocation9] sm:$0xff] %v281
    // Predicated region
    $region46: #{tpu_custom_call.1} parent=1 // pred_check
      _
    $region47: #{tpu_custom_call.1} parent=1 // pred_check_branch
      %284 = sbr.rel (0) target = $region49
    $region48: #{tpu_custom_call.1} parent=1 // pred_region
      %286 = vsyncadd [#allocation5], 0
      %s288 = sshll.u32 [#allocation9], 4
      %s289 = int_to_ptr.vmem [resolvable:$true] %s288
      %s290 = sshll.u32 %s7, 4
      %s291 = int_to_ptr.hbm [resolvable:$true] %s290
      %293 = dma.vmem_to_hbm [thread:$0]  %s289, 128, %s291, [#allocation5]
    $region49: #{tpu_custom_call.1} parent=1 // pred_fallthru
      _
    // Predicated region
    $region50: #{tpu_custom_call.1} parent=1 // pred_check
      _
    $region51: #{tpu_custom_call.1} parent=1 // pred_check_branch
      %295 = sbr.rel (0) target = $region53
    $region52: #{tpu_custom_call.1} parent=1 // pred_region
      %297 = dma.done [#allocation5], 128
    $region53: #{tpu_custom_call.1} parent=1 // pred_fallthru
      _
    %298 = vsyncpa [#allocation4], 1
    %299 = vsyncpa [#allocation7], 1
    %300 = vsyncpa [#allocation5], 1

// kernel: tpu_custom_call.1
$region0: #{tpu_custom_call.1}
  #allocation0 [shape = 'u32[]', space=smem, size = 0x4, offset = 0x4, fixed_abs, tag = 'smem constant byte address 0x4 - core index']
  #allocation1 [shape = 'u32[72,128]{1,0:T(1,128)}', space=vmem, size = 0x9000, scoped, tag = 'internal scratch']
  #allocation2 [shape = 'bf16[8,128]{1,0:T(8,128)(2,1)}', space=vmem, size = 0x800, scoped, tag = 'scratch operand']
  %s0 = inlined_call_operand.hbm [shape: bf16[8,32], index: 0, kind: input, shape index: {}]
  %s1 = inlined_call_operand.hbm [shape: bf16[32,128], index: 1, kind: input, shape index: {}]
  %s2 = inlined_call_operand.vmem [shape: f32[1,128], index: 2, kind: input, shape index: {}]
  %s3 = inlined_call_operand.vmem [shape: f32[1,128], index: 3, kind: input, shape index: {}]
  %s4 = inlined_call_operand.hbm [shape: bf16[128,128], index: 4, kind: input, shape index: {}]
  %s5 = inlined_call_operand.vmem [shape: f32[1,128], index: 5, kind: input, shape index: {}]
  %s6 = inlined_call_operand.vmem [shape: f32[1,128], index: 6, kind: input, shape index: {}]
  %s7 = inlined_call_operand.hbm [shape: f32[8,128], index: 7, kind: output, shape index: {}]
  %s8 = sld [smem:[#allocation0]]
  $region54: #{tpu_custom_call.1} parent=0
    _
  %s10 = ssub.s32 1, %s8
  %s11 = scalar_select 0, %s10, %s8
  $region1: #{tpu_custom_call.1} parent=0
    #allocation3 [shape = 'u8[2048]{0}', space=vmem, size = 0x800, scoped, tag = 'input window, operand 0, single buffered']
    #allocation4 [shape = 's32[1]{0}', space=sflag, size = 0x4, scoped, tag = 'scoped memory for tpu_custom_call.1']
    #allocation5 [shape = 's32[1]{0}', space=sflag, size = 0x4, scoped, tag = 'scoped memory for tpu_custom_call.1']
    #allocation6 [shape = 'u8[8192]{0}', space=vmem, size = 0x2000, scoped, tag = 'input window, operand 1, single buffered']
    #allocation7 [shape = 's32[1]{0}', space=sflag, size = 0x4, scoped, tag = 'scoped memory for tpu_custom_call.1']
    #allocation8 [shape = 'u8[32768]{0}', space=vmem, size = 0x8000, scoped, tag = 'input window, operand 4, single buffered']
    #allocation9 [shape = 'u8[4096]{0}', space=vmem, size = 0x1000, scoped, tag = 'output window, operand 0, single buffered']
    %12 = vsyncpa [#allocation4], 0
    %13 = vsyncpa [#allocation7], 0
    %14 = vsyncpa [#allocation5], 0
    // Predicated region
    $region2: #{tpu_custom_call.1} parent=1 // pred_check
      _
    $region3: #{tpu_custom_call.1} parent=1 // pred_check_branch
      %16 = sbr.rel (0) target = $region5
    $region4: #{tpu_custom_call.1} parent=1 // pred_region
      %18 = vsyncadd [#allocation4], 0
      %s20 = sshll.u32 %s0, 4
      %s21 = int_to_ptr.hbm [resolvable:$true] %s20
      %s22 = sshll.u32 [#allocation3], 4
      %s23 = int_to_ptr.vmem [resolvable:$true] %s22
      %25 = dma.hbm_to_vmem [thread:$0]  %s21, 64, %s23, [#allocation4]
    $region5: #{tpu_custom_call.1} parent=1 // pred_fallthru
      _
    // Predicated region
    $region6: #{tpu_custom_call.1} parent=1 // pred_check
      _
    $region7: #{tpu_custom_call.1} parent=1 // pred_check_branch
      %27 = sbr.rel (0) target = $region9
    $region8: #{tpu_custom_call.1} parent=1 // pred_region
      %29 = vsyncadd [#allocation7], 0
      %s30 = sshll.u32 %s1, 4
      %s31 = int_to_ptr.hbm [resolvable:$true] %s30
      %s32 = sshll.u32 [#allocation6], 4
      %s33 = int_to_ptr.vmem [resolvable:$true] %s32
      %38 = dma.hbm_to_vmem [thread:$0]  %s31, 256, %s33, [#allocation7], 64, 64, 4
    $region9: #{tpu_custom_call.1} parent=1 // pred_fallthru
      _
    // Predicated region
    $region10: #{tpu_custom_call.1} parent=1 // pred_check
      _
    $region11: #{tpu_custom_call.1} parent=1 // pred_check_branch
      %40 = sbr.rel (0) target = $region13
    $region12: #{tpu_custom_call.1} parent=1 // pred_region
      _
    $region13: #{tpu_custom_call.1} parent=1 // pred_fallthru
      _
    // Predicated region
    $region14: #{tpu_custom_call.1} parent=1 // pred_check
      _
    $region15: #{tpu_custom_call.1} parent=1 // pred_check_branch
      %42 = sbr.rel (0) target = $region17
    $region16: #{tpu_custom_call.1} parent=1 // pred_region
      _
    $region17: #{tpu_custom_call.1} parent=1 // pred_fallthru
      _
    // Predicated region
    $region18: #{tpu_custom_call.1} parent=1 // pred_check
      _
    $region19: #{tpu_custom_call.1} parent=1 // pred_check_branch
      %44 = sbr.rel (0) target = $region21
    $region20: #{tpu_custom_call.1} parent=1 // pred_region
      %46 = vsyncadd [#allocation7], 0
      %s47 = sshll.u32 %s4, 4
      %s48 = int_to_ptr.hbm [resolvable:$true] %s47
      %s49 = sshll.u32 [#allocation8], 4
      %s50 = int_to_ptr.vmem [resolvable:$true] %s49
      %55 = dma.hbm_to_vmem [thread:$0]  %s48, 1024, %s50, [#allocation7], 64, 64, 4
    $region21: #{tpu_custom_call.1} parent=1 // pred_fallthru
      _
    // Predicated region
    $region22: #{tpu_custom_call.1} parent=1 // pred_check
      _
    $region23: #{tpu_custom_call.1} parent=1 // pred_check_branch
      %57 = sbr.rel (0) target = $region25
    $region24: #{tpu_custom_call.1} parent=1 // pred_region
      _
    $region25: #{tpu_custom_call.1} parent=1 // pred_fallthru
      _
    // Predicated region
    $region26: #{tpu_custom_call.1} parent=1 // pred_check
      _
    $region27: #{tpu_custom_call.1} parent=1 // pred_check_branch
      %59 = sbr.rel (0) target = $region29
    $region28: #{tpu_custom_call.1} parent=1 // pred_region
      _
    $region29: #{tpu_custom_call.1} parent=1 // pred_fallthru
      _
    // Predicated region
    $region30: #{tpu_custom_call.1} parent=1 // pred_check
      _
    $region31: #{tpu_custom_call.1} parent=1 // pred_check_branch
      %61 = sbr.rel (0) target = $region33
    $region32: #{tpu_custom_call.1} parent=1 // pred_region
      %63 = dma.done [#allocation4], 64
    $region33: #{tpu_custom_call.1} parent=1 // pred_fallthru
      _
    // Predicated region
    $region34: #{tpu_custom_call.1} parent=1 // pred_check
      _
    $region35: #{tpu_custom_call.1} parent=1 // pred_check_branch
      %65 = sbr.rel (0) target = $region37
    $region36: #{tpu_custom_call.1} parent=1 // pred_region
      %67 = dma.done [#allocation7], 256
    $region37: #{tpu_custom_call.1} parent=1 // pred_fallthru
      _
    // Predicated region
    $region38: #{tpu_custom_call.1} parent=1 // pred_check
      _
    $region39: #{tpu_custom_call.1} parent=1 // pred_check_branch
      %69 = sbr.rel (0) target = $region41
    $region40: #{tpu_custom_call.1} parent=1 // pred_region
      %71 = dma.done [#allocation7], 1024
    $region41: #{tpu_custom_call.1} parent=1 // pred_fallthru
      _
    %p73 = scmp.eq.s32.totalorder 0, 0
    // Predicated region
    $region42: #{tpu_custom_call.1} parent=1 // pred_check
      %p74 = pneg %p73
    $region43: #{tpu_custom_call.1} parent=1 // pred_check_branch
      %76 = sbr.rel (%p74) target = $region45
    $region44: #{tpu_custom_call.1} parent=1 // pred_region
      %v77 = vld [vmem:[#allocation3] sm:$0xf]
      %v78 = vld [vmem:[#allocation6] sm:$0xf]
      %v79 = vld [vmem:[#allocation6 + $0x4] sm:$0xf]
      %v80 = vld [vmem:[#allocation6 + $0x8] sm:$0xf]
      %v81 = vld [vmem:[#allocation6 + $0xc] sm:$0xf]
      %v86 = vunpack.c.l.b16 %v78
      %v87 = vunpack.c.l.b16 %v79
      %v88 = vunpack.c.l.b16 %v80
      %v89 = vunpack.c.l.b16 %v81
      %v90 = vpack.c.b16 %v87, %v86
      %v91 = vpack.c.b16 %v89, %v88
      %vm94 = vcmask 261120
      %v96 = vsel %vm94, %v77, 0
      %98 = vmatpush.bf16.msra.mxu0 0
      %99 = vmatpush.bf16.msra.mxu0 0
      %100 = vmatpush.bf16.msra.mxu0 0
      %101 = vmatpush.bf16.msra.mxu0 0
      %102 = vmatpush.bf16.msra.mxu0 0
      %103 = vmatpush.bf16.msra.mxu0 0
      %104 = vmatpush.bf16.msra.mxu0 %v91
      %105 = vmatpush.bf16.msra.mxu0 %v90
      %106 = vmatmul.bf16.gmra.mxu0 %v96
      %v107 = vpop.f32.mrf.mxu0
      %v108 = vadd.f32 0.0, %v107
      %v109 = vpop.f32.mrf.mxu0
      %110 = vdwg.mxu0
      %v111 = vld [vmem:[%s2] sm:$0x1]
      %v112 = vld [vmem:[%s3] sm:$0x1]
      %v113 = vrot.slane %v108, 4
      %v114 = vadd.f32 %v108, %v113
      %v115 = vrot.slane %v114, 2
      %v116 = vadd.f32 %v114, %v115
      %v117 = vrot.slane %v116, 1
      %v118 = vadd.f32 %v116, %v117
      %v119 = vrcp.pop 8.0
      %v120 = vmul.f32 8.0, %v119
      %v121 = vsub.f32 1.0, %v120
      %v122 = vmul.f32 %v119, %v121
      %v123 = vadd.f32 %v119, %v122
      %vm124 = vweird.f32 %v119
      %v125 = vsel %vm124, %v119, %v123
      %v126 = vmul.f32 %v118, %v125
      %v127 = vsub.f32 %v108, %v126
      %v128 = vmul.f32 %v127, %v127
      %v129 = vrot.slane %v128, 4
      %v130 = vadd.f32 %v128, %v129
      %v131 = vrot.slane %v130, 2
      %v132 = vadd.f32 %v130, %v131
      %v133 = vrot.slane %v132, 1
      %v134 = vadd.f32 %v132, %v133
      %v135 = vmul.f32 %v134, %v125
      %v136 = vadd.f32 %v135, 1e-05
      %v137 = vrsqrt.pop %v136
      %v138 = vmul.f32 %v137, %v136
      %v139 = vmul.f32 %v138, %v137
      %v140 = vmul.f32 0.5, %v139
      %v141 = vsub.f32 1.5, %v140
      %v142 = vmul.f32 %v137, %v141
      %vm143 = vweird.f32 %v136
      %vm144 = vweird.f32 %v137
      %vm145 = vmor %vm143, %vm144
      %v146 = vsel %vm145, %v137, %v142
      %v147 = vmul.f32 %v111, %v146
      %v149 = vperm.slane %v147, 0
      %v151 = vmul.f32 %v127, %v149
      %v153 = vperm.slane %v112, 0
      %v155 = vadd.f32 %v151, %v153
      %v156 = vmax.f32 %v155, 0.0
      %v157 = vpack.c.bf16 %v156, %v156
      %158 = vst [vmem:[#allocation2] sm:$0xf] %v157
    $region45: #{tpu_custom_call.1} parent=1 // pred_fallthru
      _
    %v159 = vld [vmem:[#allocation2] sm:$0xf]
    %v160 = vld [vmem:[#allocation8] sm:$0xf]
    %v161 = vld [vmem:[#allocation8 + $0x4] sm:$0xf]
    %v162 = vld [vmem:[#allocation8 + $0x8] sm:$0xf]
    %v163 = vld [vmem:[#allocation8 + $0xc] sm:$0xf]
    %v164 = vld [vmem:[#allocation8 + $0x10] sm:$0xf]
    %v165 = vld [vmem:[#allocation8 + $0x14] sm:$0xf]
    %v166 = vld [vmem:[#allocation8 + $0x18] sm:$0xf]
    %v167 = vld [vmem:[#allocation8 + $0x1c] sm:$0xf]
    %v168 = vld [vmem:[#allocation8 + $0x20] sm:$0xf]
    %v169 = vld [vmem:[#allocation8 + $0x24] sm:$0xf]
    %v170 = vld [vmem:[#allocation8 + $0x28] sm:$0xf]
    %v171 = vld [vmem:[#allocation8 + $0x2c] sm:$0xf]
    %v172 = vld [vmem:[#allocation8 + $0x30] sm:$0xf]
    %v173 = vld [vmem:[#allocation8 + $0x34] sm:$0xf]
    %v174 = vld [vmem:[#allocation8 + $0x38] sm:$0xf]
    %v175 = vld [vmem:[#allocation8 + $0x3c] sm:$0xf]
    %v192 = vunpack.c.l.b16 %v160
    %v193 = vunpack.c.l.b16 %v161
    %v194 = vunpack.c.l.b16 %v162
    %v195 = vunpack.c.l.b16 %v163
    %v196 = vunpack.c.l.b16 %v164
    %v197 = vunpack.c.l.b16 %v165
    %v198 = vunpack.c.l.b16 %v166
    %v199 = vunpack.c.l.b16 %v167
    %v200 = vunpack.c.l.b16 %v168
    %v201 = vunpack.c.l.b16 %v169
    %v202 = vunpack.c.l.b16 %v170
    %v203 = vunpack.c.l.b16 %v171
    %v204 = vunpack.c.l.b16 %v172
    %v205 = vunpack.c.l.b16 %v173
    %v206 = vunpack.c.l.b16 %v174
    %v207 = vunpack.c.l.b16 %v175
    %v208 = vpack.c.b16 %v193, %v192
    %v209 = vpack.c.b16 %v195, %v194
    %v210 = vpack.c.b16 %v197, %v196
    %v211 = vpack.c.b16 %v199, %v198
    %v212 = vpack.c.b16 %v201, %v200
    %v213 = vpack.c.b16 %v203, %v202
    %v214 = vpack.c.b16 %v205, %v204
    %v215 = vpack.c.b16 %v207, %v206
    %224 = vmatpush.bf16.msra.mxu0 %v215
    %225 = vmatpush.bf16.msra.mxu0 %v214
    %226 = vmatpush.bf16.msra.mxu0 %v213
    %227 = vmatpush.bf16.msra.mxu0 %v212
    %228 = vmatpush.bf16.msra.mxu0 %v211
    %229 = vmatpush.bf16.msra.mxu0 %v210
    %230 = vmatpush.bf16.msra.mxu0 %v209
    %231 = vmatpush.bf16.msra.mxu0 %v208
    %232 = vmatmul.bf16.gmra.mxu0 %v159
    %v233 = vpop.f32.mrf.mxu0
    %v234 = vadd.f32 0.0, %v233
    %v235 = vpop.f32.mrf.mxu0
    %236 = vdwg.mxu0
    %v237 = vld [vmem:[%s5] sm:$0x1]
    %v238 = vld [vmem:[%s6] sm:$0x1]
    %v239 = vrot.slane %v234, 4
    %v240 = vadd.f32 %v234, %v239
    %v241 = vrot.slane %v240, 2
    %v242 = vadd.f32 %v240, %v241
    %v243 = vrot.slane %v242, 1
    %v244 = vadd.f32 %v242, %v243
    %v245 = vrcp.pop 8.0
    %v246 = vmul.f32 8.0, %v245
    %v247 = vsub.f32 1.0, %v246
    %v248 = vmul.f32 %v245, %v247
    %v249 = vadd.f32 %v245, %v248
    %vm250 = vweird.f32 %v245
    %v251 = vsel %vm250, %v245, %v249
    %v252 = vmul.f32 %v244, %v251
    %v253 = vsub.f32 %v234, %v252
    %v254 = vmul.f32 %v253, %v253
    %v255 = vrot.slane %v254, 4
    %v256 = vadd.f32 %v254, %v255
    %v257 = vrot.slane %v256, 2
    %v258 = vadd.f32 %v256, %v257
    %v259 = vrot.slane %v258, 1
    %v260 = vadd.f32 %v258, %v259
    %v261 = vmul.f32 %v260, %v251
    %v262 = vadd.f32 %v261, 1e-05
    %v263 = vrsqrt.pop %v262
    %v264 = vmul.f32 %v263, %v262
    %v265 = vmul.f32 %v264, %v263
    %v266 = vmul.f32 0.5, %v265
    %v267 = vsub.f32 1.5, %v266
    %v268 = vmul.f32 %v263, %v267
    %vm269 = vweird.f32 %v262
    %vm270 = vweird.f32 %v263
    %vm271 = vmor %vm269, %vm270
    %v272 = vsel %vm271, %v263, %v268
    %v273 = vmul.f32 %v237, %v272
    %v275 = vperm.slane %v273, 0
    %v277 = vmul.f32 %v253, %v275
    %v279 = vperm.slane %v238, 0
    %v281 = vadd.f32 %v277, %v279
    %282 = vst [vmem:[#allocation9] sm:$0xff] %v281
    // Predicated region
    $region46: #{tpu_custom_call.1} parent=1 // pred_check
      _
    $region47: #{tpu_custom_call.1} parent=1 // pred_check_branch
      %284 = sbr.rel (0) target = $region49
    $region48: #{tpu_custom_call.1} parent=1 // pred_region
      %286 = vsyncadd [#allocation5], 0
      %s288 = sshll.u32 [#allocation9], 4
      %s289 = int_to_ptr.vmem [resolvable:$true] %s288
      %s290 = sshll.u32 %s7, 4
      %s291 = int_to_ptr.hbm [resolvable:$true] %s290
      %293 = dma.vmem_to_hbm [thread:$0]  %s289, 128, %s291, [#allocation5]
    $region49: #{tpu_custom_call.1} parent=1 // pred_fallthru
      _
    // Predicated region
    $region50: #{tpu_custom_call.1} parent=1 // pred_check
      _
    $region51: #{tpu_custom_call.1} parent=1 // pred_check_branch
      %295 = sbr.rel (0) target = $region53
    $region52: #{tpu_custom_call.1} parent=1 // pred_region
      %297 = dma.done [#allocation5], 128
    $region53: #{tpu_custom_call.1} parent=1 // pred_fallthru
      _
    %298 = vsyncpa [#allocation4], 1
    %299 = vsyncpa [#allocation7], 1
    %300 = vsyncpa [#allocation5], 1

</llo_original>
